<compile_context>
chip_gen: v6e
topology: v6e:2x2x1
jax: 0.10.0
libtpu: 0.0.40
codegen_flags: <defaults>
</compile_context>

<pallas_src>
import functools

import jax
import jax.numpy as jnp
from jax.experimental import pallas as pl
from jax.experimental.pallas import tpu as pltpu


def residual_block_kernel(x_ref, w1_ref, b1_ref, w2_ref, b2_ref, o_ref, *, H, W, C):
    """One batch element per grid step.

    x_ref  : (1, H, W*C)            input slab, NHWC flattened over (W, C)
    w1_ref : (3, (W+2)*C, W*C)      conv1 banded weights, one band per dy
    b1_ref : (1, W*C)               conv1 bias tiled along W
    w2_ref : (3, (W+2)*C, W*C)      conv2 banded weights
    b2_ref : (1, W*C)               conv2 bias tiled along W
    o_ref  : (1, H, W*C)            output slab
    """
    f32 = jnp.float32
    WC = W * C
    WPC = (W + 2) * C

    x2d = x_ref[0].astype(f32)                                # (H, W*C)

    # --- zero-pad x in-register: (H, W*C) -> (H+2, (W+2)*C) ---
    zcol = jnp.zeros((H, C), f32)
    zrow = jnp.zeros((1, WPC), f32)
    xp = jnp.concatenate([zcol, x2d, zcol], axis=1)           # (H, (W+2)*C)
    xp = jnp.concatenate([zrow, xp, zrow], axis=0)            # (H+2, (W+2)*C)

    # --- conv1: 3 banded matmuls (one per dy), lane-dense K and N ---
    acc = jnp.zeros((H, WC), f32)
    for dy in range(3):
        acc = acc + jnp.dot(xp[dy:dy + H, :], w1_ref[dy].astype(f32),
                            preferred_element_type=f32)
    acc = acc + b1_ref[...].astype(f32)                       # (1, W*C) broadcast

    # LeakyReLU (negative_slope = 0.01)
    h = jnp.where(acc > 0, acc, 0.01 * acc)                   # (H, W*C)

    # --- zero-pad h in-register (no VMEM scratch, no HBM round trip) ---
    hp = jnp.concatenate([zcol, h, zcol], axis=1)             # (H, (W+2)*C)
    hp = jnp.concatenate([zrow, hp, zrow], axis=0)            # (H+2, (W+2)*C)

    # --- conv2: 3 banded matmuls ---
    acc2 = jnp.zeros((H, WC), f32)
    for dy in range(3):
        acc2 = acc2 + jnp.dot(hp[dy:dy + H, :], w2_ref[dy].astype(f32),
                              preferred_element_type=f32)
    acc2 = acc2 + b2_ref[...].astype(f32)

    # --- residual add (x2d is already the lane-dense center, no slicing needed) ---
    o_ref[0] = (x2d + acc2).astype(o_ref.dtype)


def _banded_conv_weights(w, W):
    """PyTorch OIHW (Cout, Cin, 3, 3) -> (3, (W+2)*C, W*C) banded matrices.

    B_dy[(x+dx)*C + ci, x*C + co] = w[co, ci, dy, dx], so that
        out2d[y] = sum_dy xpad2d[y+dy, :] @ B_dy
    reproduces the cross-correlation with padding=1 along both H and W.
    """
    C = w.shape[0]
    cols = jnp.arange(W)
    bands = []
    for dy in range(3):
        band = jnp.zeros(((W + 2) * C, W * C), w.dtype)
        for dx in range(3):
            sel = jnp.zeros((W + 2, W), w.dtype).at[cols + dx, cols].set(1)
            tap = w[:, :, dy, dx].T                           # (Cin, Cout)
            band = band + jnp.kron(sel, tap)
        bands.append(band)
    return jnp.stack(bands, axis=0)                           # (3, (W+2)*C, W*C)


def residual_block(x, w1, b1, w2, b2):
    """x: (N, C, H, W) NCHW.  w1, w2: (C, C, 3, 3) PyTorch OIHW.  b1, b2: (C,)."""
    N, C, H, W = x.shape
    WC = W * C
    WPC = (W + 2) * C

    # NCHW -> NHWC -> lane-dense (N, H, W*C).  No spatial pre-pad (done in-kernel).
    x2d = jnp.transpose(x, (0, 2, 3, 1)).reshape(N, H, WC)

    w1_b = _banded_conv_weights(w1, W)                        # (3, (W+2)*C, W*C)
    w2_b = _banded_conv_weights(w2, W)
    b1_r = jnp.tile(b1, W).reshape(1, WC)                     # bias per (x, co) lane
    b2_r = jnp.tile(b2, W).reshape(1, WC)

    kernel = functools.partial(residual_block_kernel, H=H, W=W, C=C)

    out2d = pl.pallas_call(
        kernel,
        out_shape=jax.ShapeDtypeStruct((N, H, WC), x.dtype),
        grid_spec=pltpu.PrefetchScalarGridSpec(
            num_scalar_prefetch=0,
            grid=(N,),
            in_specs=[
                pl.BlockSpec((1, H, WC), lambda n: (n, 0, 0)),
                pl.BlockSpec((3, WPC, WC), lambda n: (0, 0, 0)),   # constant -> resident
                pl.BlockSpec((1, WC), lambda n: (0, 0)),
                pl.BlockSpec((3, WPC, WC), lambda n: (0, 0, 0)),
                pl.BlockSpec((1, WC), lambda n: (0, 0)),
            ],
            out_specs=pl.BlockSpec((1, H, WC), lambda n: (n, 0, 0)),
        ),
        compiler_params=pltpu.CompilerParams(
            dimension_semantics=("parallel",),                 # v7x: 2 TCs split batch
        ),
    )(x2d, w1_b, b1_r, w2_b, b2_r)

    # (N, H, W*C) -> NHWC -> NCHW
    return jnp.transpose(out2d.reshape(N, H, W, C), (0, 3, 1, 2))


def residual_block_ref(x, w1, b1, w2, b2):
    """Pure-JAX reference mirroring the PyTorch module."""
    dn = ('NCHW', 'OIHW', 'NCHW')
    h = jax.lax.conv_general_dilated(
        x, w1, window_strides=(1, 1), padding='SAME', dimension_numbers=dn,
        precision=jax.lax.Precision.HIGHEST) + b1[None, :, None, None]
    h = jnp.where(h > 0, h, 0.01 * h)                         # LeakyReLU(0.01)
    y = jax.lax.conv_general_dilated(
        h, w2, window_strides=(1, 1), padding='SAME', dimension_numbers=dn,
        precision=jax.lax.Precision.HIGHEST) + b2[None, :, None, None]
    return x + y


if __name__ == "__main__":
    # ResidualBlock(in_features=8) on a small NCHW input (W*C = 128 -> one vreg row)
    N, C, H, W = 2, 8, 16, 16

    key = jax.random.PRNGKey(0)
    kx, kw1, kb1, kw2, kb2 = jax.random.split(key, 5)

    x = jax.random.normal(kx, (N, C, H, W), dtype=jnp.float32)
    w1 = jax.random.normal(kw1, (C, C, 3, 3), dtype=jnp.float32) * 0.1
    b1 = jax.random.normal(kb1, (C,), dtype=jnp.float32) * 0.1
    w2 = jax.random.normal(kw2, (C, C, 3, 3), dtype=jnp.float32) * 0.1
    b2 = jax.random.normal(kb2, (C,), dtype=jnp.float32) * 0.1

    out = jax.block_until_ready(residual_block(x, w1, b1, w2, b2))
    ref = jax.block_until_ready(residual_block_ref(x, w1, b1, w2, b2))

    assert out.shape == (N, C, H, W)
    assert jnp.allclose(out, ref, atol=1e-4, rtol=1e-4), float(jnp.max(jnp.abs(out - ref)))
    print("KERNEL_OK")
</pallas_src>

<mosaic_0001>
module attributes {stable_mosaic.version = 11 : i64} {
  func.func @residual_block_kernel(%arg0: i32, %arg1: memref<1x16x128xf32, #tpu.memory_space<vmem>>, %arg2: memref<3x144x128xf32, #tpu.memory_space<vmem>>, %arg3: memref<1x128xf32, #tpu.memory_space<vmem>>, %arg4: memref<3x144x128xf32, #tpu.memory_space<vmem>>, %arg5: memref<1x128xf32, #tpu.memory_space<vmem>>, %arg6: memref<1x16x128xf32, #tpu.memory_space<vmem>>) attributes {dimension_semantics = [#tpu.dimension_semantics<parallel>], iteration_bounds = array<i64: 2>, scalar_prefetch = 0 : i64, scratch_operands = 0 : i64, tpu.core_type = #tpu.core_type<tc>, window_params = [{transform_indices = @transform_0, window_bounds = array<i64: 1, 16, 128>}, {pipeline_mode = #tpu.pipeline_mode<synchronous>, transform_indices = @transform_1, window_bounds = array<i64: 3, 144, 128>}, {pipeline_mode = #tpu.pipeline_mode<synchronous>, transform_indices = @transform_2, window_bounds = array<i64: 1, 128>}, {pipeline_mode = #tpu.pipeline_mode<synchronous>, transform_indices = @transform_3, window_bounds = array<i64: 3, 144, 128>}, {pipeline_mode = #tpu.pipeline_mode<synchronous>, transform_indices = @transform_4, window_bounds = array<i64: 1, 128>}, {transform_indices = @transform_5, window_bounds = array<i64: 1, 16, 128>}]} {
    %c0 = arith.constant 0 : index
    %c0_0 = arith.constant 0 : index
    %c0_1 = arith.constant 0 : index
    %0 = vector.load %arg1[%c0, %c0_0, %c0_1] : memref<1x16x128xf32, #tpu.memory_space<vmem>>, vector<1x16x128xf32>
    %1 = vector.shape_cast %0 : vector<1x16x128xf32> to vector<16x128xf32>
    %cst = arith.constant 0.000000e+00 : f32
    %2 = vector.broadcast %cst : f32 to vector<16x8xf32>
    %cst_2 = arith.constant 0.000000e+00 : f32
    %3 = vector.broadcast %cst_2 : f32 to vector<1x144xf32>
    %4 = tpu.concatenate %2, %1, %2 in 1 : vector<16x8xf32>, vector<16x128xf32>, vector<16x8xf32> -> vector<16x144xf32>
    %5 = tpu.concatenate %3, %4, %3 in 0 : vector<1x144xf32>, vector<16x144xf32>, vector<1x144xf32> -> vector<18x144xf32>
    %cst_3 = arith.constant 0.000000e+00 : f32
    %6 = vector.broadcast %cst_3 : f32 to vector<16x128xf32>
    %7 = vector.extract_strided_slice %5 {offsets = [0, 0], sizes = [16, 144], strides = [1, 1]} : vector<18x144xf32> to vector<16x144xf32>
    %c0_4 = arith.constant 0 : index
    %c0_5 = arith.constant 0 : index
    %c0_6 = arith.constant 0 : index
    %8 = vector.load %arg2[%c0_4, %c0_5, %c0_6] : memref<3x144x128xf32, #tpu.memory_space<vmem>>, vector<1x144x128xf32>
    %9 = vector.shape_cast %8 : vector<1x144x128xf32> to vector<144x128xf32>
    %cst_7 = arith.constant dense<0.000000e+00> : vector<16x128xf32>
    %10 = tpu.matmul %7, %9, %cst_7 {dimension_numbers = #tpu.dot_dimension_numbers<[1], [0], [0], [1], [0, 0, 1, 1], [], []>} : vector<16x144xf32>, vector<144x128xf32>, vector<16x128xf32> -> vector<16x128xf32>
    %11 = arith.addf %6, %10 : vector<16x128xf32>
    %12 = vector.extract_strided_slice %5 {offsets = [1, 0], sizes = [16, 144], strides = [1, 1]} : vector<18x144xf32> to vector<16x144xf32>
    %c1 = arith.constant 1 : index
    %c0_8 = arith.constant 0 : index
    %c0_9 = arith.constant 0 : index
    %13 = vector.load %arg2[%c1, %c0_8, %c0_9] : memref<3x144x128xf32, #tpu.memory_space<vmem>>, vector<1x144x128xf32>
    %14 = vector.shape_cast %13 : vector<1x144x128xf32> to vector<144x128xf32>
    %cst_10 = arith.constant dense<0.000000e+00> : vector<16x128xf32>
    %15 = tpu.matmul %12, %14, %cst_10 {dimension_numbers = #tpu.dot_dimension_numbers<[1], [0], [0], [1], [0, 0, 1, 1], [], []>} : vector<16x144xf32>, vector<144x128xf32>, vector<16x128xf32> -> vector<16x128xf32>
    %16 = arith.addf %11, %15 : vector<16x128xf32>
    %17 = vector.extract_strided_slice %5 {offsets = [2, 0], sizes = [16, 144], strides = [1, 1]} : vector<18x144xf32> to vector<16x144xf32>
    %c2 = arith.constant 2 : index
    %c0_11 = arith.constant 0 : index
    %c0_12 = arith.constant 0 : index
    %18 = vector.load %arg2[%c2, %c0_11, %c0_12] : memref<3x144x128xf32, #tpu.memory_space<vmem>>, vector<1x144x128xf32>
    %19 = vector.shape_cast %18 : vector<1x144x128xf32> to vector<144x128xf32>
    %cst_13 = arith.constant dense<0.000000e+00> : vector<16x128xf32>
    %20 = tpu.matmul %17, %19, %cst_13 {dimension_numbers = #tpu.dot_dimension_numbers<[1], [0], [0], [1], [0, 0, 1, 1], [], []>} : vector<16x144xf32>, vector<144x128xf32>, vector<16x128xf32> -> vector<16x128xf32>
    %21 = arith.addf %16, %20 : vector<16x128xf32>
    %c0_14 = arith.constant 0 : index
    %c0_15 = arith.constant 0 : index
    %22 = vector.load %arg3[%c0_14, %c0_15] : memref<1x128xf32, #tpu.memory_space<vmem>>, vector<1x128xf32>
    %23 = vector.broadcast %22 : vector<1x128xf32> to vector<16x128xf32>
    %24 = arith.addf %21, %23 : vector<16x128xf32>
    %cst_16 = arith.constant 0.000000e+00 : f32
    %25 = vector.broadcast %cst_16 : f32 to vector<16x128xf32>
    %26 = arith.cmpf ogt, %24, %25 : vector<16x128xf32>
    %cst_17 = arith.constant 0.00999999977 : f32
    %27 = vector.broadcast %cst_17 : f32 to vector<16x128xf32>
    %28 = arith.mulf %27, %24 : vector<16x128xf32>
    %29 = arith.select %26, %24, %28 : vector<16x128xi1>, vector<16x128xf32>
    %30 = tpu.concatenate %2, %29, %2 in 1 : vector<16x8xf32>, vector<16x128xf32>, vector<16x8xf32> -> vector<16x144xf32>
    %31 = tpu.concatenate %3, %30, %3 in 0 : vector<1x144xf32>, vector<16x144xf32>, vector<1x144xf32> -> vector<18x144xf32>
    %cst_18 = arith.constant 0.000000e+00 : f32
    %32 = vector.broadcast %cst_18 : f32 to vector<16x128xf32>
    %33 = vector.extract_strided_slice %31 {offsets = [0, 0], sizes = [16, 144], strides = [1, 1]} : vector<18x144xf32> to vector<16x144xf32>
    %c0_19 = arith.constant 0 : index
    %c0_20 = arith.constant 0 : index
    %c0_21 = arith.constant 0 : index
    %34 = vector.load %arg4[%c0_19, %c0_20, %c0_21] : memref<3x144x128xf32, #tpu.memory_space<vmem>>, vector<1x144x128xf32>
    %35 = vector.shape_cast %34 : vector<1x144x128xf32> to vector<144x128xf32>
    %cst_22 = arith.constant dense<0.000000e+00> : vector<16x128xf32>
    %36 = tpu.matmul %33, %35, %cst_22 {dimension_numbers = #tpu.dot_dimension_numbers<[1], [0], [0], [1], [0, 0, 1, 1], [], []>} : vector<16x144xf32>, vector<144x128xf32>, vector<16x128xf32> -> vector<16x128xf32>
    %37 = arith.addf %32, %36 : vector<16x128xf32>
    %38 = vector.extract_strided_slice %31 {offsets = [1, 0], sizes = [16, 144], strides = [1, 1]} : vector<18x144xf32> to vector<16x144xf32>
    %c1_23 = arith.constant 1 : index
    %c0_24 = arith.constant 0 : index
    %c0_25 = arith.constant 0 : index
    %39 = vector.load %arg4[%c1_23, %c0_24, %c0_25] : memref<3x144x128xf32, #tpu.memory_space<vmem>>, vector<1x144x128xf32>
    %40 = vector.shape_cast %39 : vector<1x144x128xf32> to vector<144x128xf32>
    %cst_26 = arith.constant dense<0.000000e+00> : vector<16x128xf32>
    %41 = tpu.matmul %38, %40, %cst_26 {dimension_numbers = #tpu.dot_dimension_numbers<[1], [0], [0], [1], [0, 0, 1, 1], [], []>} : vector<16x144xf32>, vector<144x128xf32>, vector<16x128xf32> -> vector<16x128xf32>
    %42 = arith.addf %37, %41 : vector<16x128xf32>
    %43 = vector.extract_strided_slice %31 {offsets = [2, 0], sizes = [16, 144], strides = [1, 1]} : vector<18x144xf32> to vector<16x144xf32>
    %c2_27 = arith.constant 2 : index
    %c0_28 = arith.constant 0 : index
    %c0_29 = arith.constant 0 : index
    %44 = vector.load %arg4[%c2_27, %c0_28, %c0_29] : memref<3x144x128xf32, #tpu.memory_space<vmem>>, vector<1x144x128xf32>
    %45 = vector.shape_cast %44 : vector<1x144x128xf32> to vector<144x128xf32>
    %cst_30 = arith.constant dense<0.000000e+00> : vector<16x128xf32>
    %46 = tpu.matmul %43, %45, %cst_30 {dimension_numbers = #tpu.dot_dimension_numbers<[1], [0], [0], [1], [0, 0, 1, 1], [], []>} : vector<16x144xf32>, vector<144x128xf32>, vector<16x128xf32> -> vector<16x128xf32>
    %47 = arith.addf %42, %46 : vector<16x128xf32>
    %c0_31 = arith.constant 0 : index
    %c0_32 = arith.constant 0 : index
    %48 = vector.load %arg5[%c0_31, %c0_32] : memref<1x128xf32, #tpu.memory_space<vmem>>, vector<1x128xf32>
    %49 = vector.broadcast %48 : vector<1x128xf32> to vector<16x128xf32>
    %50 = arith.addf %47, %49 : vector<16x128xf32>
    %51 = arith.addf %1, %50 : vector<16x128xf32>
    %c0_33 = arith.constant 0 : index
    %c0_34 = arith.constant 0 : index
    %c0_35 = arith.constant 0 : index
    %52 = vector.load %arg6[%c0_33, %c0_34, %c0_35] : memref<1x16x128xf32, #tpu.memory_space<vmem>>, vector<1x16x128xf32>
    %53 = vector.shape_cast %52 : vector<1x16x128xf32> to vector<16x128xf32>
    %54 = vector.shape_cast %51 : vector<16x128xf32> to vector<1x16x128xf32>
    tpu.vector_store %arg6[%c0_33, %c0_34, %c0_35], %54 {strides = array<i32>} : memref<1x16x128xf32, #tpu.memory_space<vmem>>, vector<1x16x128xf32>,
    return
  }
  func.func @transform_0(%arg0: i32) -> (i32, i32, i32) {
    %c0_i32 = arith.constant 0 : i32
    %c0_i32_0 = arith.constant 0 : i32
    %c0_i32_1 = arith.constant 0 : i32
    return %arg0, %c0_i32, %c0_i32_0 : i32, i32, i32
  }
  func.func @transform_1(%arg0: i32) -> (i32, i32, i32) {
    %c0_i32 = arith.constant 0 : i32
    %c0_i32_0 = arith.constant 0 : i32
    %c0_i32_1 = arith.constant 0 : i32
    %c0_i32_2 = arith.constant 0 : i32
    return %c0_i32, %c0_i32_0, %c0_i32_1 : i32, i32, i32
  }
  func.func @transform_2(%arg0: i32) -> (i32, i32) {
    %c0_i32 = arith.constant 0 : i32
    %c0_i32_0 = arith.constant 0 : i32
    %c0_i32_1 = arith.constant 0 : i32
    return %c0_i32, %c0_i32_0 : i32, i32
  }
  func.func @transform_3(%arg0: i32) -> (i32, i32, i32) {
    %c0_i32 = arith.constant 0 : i32
    %c0_i32_0 = arith.constant 0 : i32
    %c0_i32_1 = arith.constant 0 : i32
    %c0_i32_2 = arith.constant 0 : i32
    return %c0_i32, %c0_i32_0, %c0_i32_1 : i32, i32, i32
  }
  func.func @transform_4(%arg0: i32) -> (i32, i32) {
    %c0_i32 = arith.constant 0 : i32
    %c0_i32_0 = arith.constant 0 : i32
    %c0_i32_1 = arith.constant 0 : i32
    return %c0_i32, %c0_i32_0 : i32, i32
  }
  func.func @transform_5(%arg0: i32) -> (i32, i32, i32) {
    %c0_i32 = arith.constant 0 : i32
    %c0_i32_0 = arith.constant 0 : i32
    %c0_i32_1 = arith.constant 0 : i32
    return %arg0, %c0_i32, %c0_i32_0 : i32, i32, i32
  }
}

</mosaic_0001>

<llo_original>
// kernel: tpu_custom_call.1
$region0: #{tpu_custom_call.1}
  #allocation0 [shape = 'u32[]', space=smem, size = 0x4, offset = 0x4, fixed_abs, tag = 'smem constant byte address 0x4 - core index']
  #allocation1 [shape = 'u32[144,128]{1,0:T(1,128)}', space=vmem, size = 0x12000, scoped, tag = 'internal scratch']
  %s0 = inlined_call_operand.hbm [shape: f32[2,16,128], index: 0, kind: input, shape index: {}]
  %s1 = inlined_call_operand.hbm [shape: f32[3,144,128], index: 1, kind: input, shape index: {}]
  %s2 = inlined_call_operand.vmem [shape: f32[1,128], index: 2, kind: input, shape index: {}]
  %s3 = inlined_call_operand.hbm [shape: f32[3,144,128], index: 3, kind: input, shape index: {}]
  %s4 = inlined_call_operand.vmem [shape: f32[1,128], index: 4, kind: input, shape index: {}]
  %s5 = inlined_call_operand.hbm [shape: f32[2,16,128], index: 5, kind: output, shape index: {}]
  %s6 = sld [smem:[#allocation0]]
  $region65: #{tpu_custom_call.1} parent=0
    _
  %s8 = ssub.s32 1, %s6
  %s9 = scalar_select 0, %s8, %s6
  $region1: #{tpu_custom_call.1} parent=0
    #allocation2 [shape = 'u8[16384]{0}', space=vmem, size = 0x4000, scoped, tag = 'input window, operand 0']
    #allocation3 [shape = 's32[2]{0}', space=sflag, size = 0x8, scoped, tag = 'scoped memory for tpu_custom_call.1']
    #allocation4 [shape = 's32[2]{0}', space=sflag, size = 0x8, scoped, tag = 'scoped memory for tpu_custom_call.1']
    #allocation5 [shape = 'u8[221184]{0}', space=vmem, size = 0x36000, scoped, tag = 'input window, operand 1, single buffered']
    #allocation6 [shape = 's32[1]{0}', space=sflag, size = 0x4, scoped, tag = 'scoped memory for tpu_custom_call.1']
    #allocation7 [shape = 'u8[221184]{0}', space=vmem, size = 0x36000, scoped, tag = 'input window, operand 3, single buffered']
    #allocation8 [shape = 'u8[16384]{0}', space=vmem, size = 0x4000, scoped, tag = 'output window, operand 0']
    %10 = vsyncpa [#allocation3], 0
    %s11 = scalar_lea.sflag [#allocation3], 1
    %12 = vsyncpa %s11, 0
    %13 = vsyncpa [#allocation6], 0
    %14 = vsyncpa [#allocation4], 0
    %s15 = scalar_lea.sflag [#allocation4], 1
    %16 = vsyncpa %s15, 0
    loop: start=0, step=1, limit=4
    $region2: #{tpu_custom_call.1} parent=1 // loop_pre_header
      _
    $region3: #{tpu_custom_call.1} parent=1 // loop_header
      %s18 = sphi 0, %s22
      %p19 = scmp.ge.s32.totalorder %s18, 4
      %s28 = sphi 0, %s30
      %s31 = sphi 0, %s28
      %s32 = sphi 0, %s31
      %s48 = sphi 0, %s32
      %s52 = sphi 0, %s52
      %s54 = sphi 0, %s52
      %s55 = sphi 0, %s54
      %s69 = sphi 0, %s55
      %s73 = sphi 0, %s73
      %s75 = sphi 0, %s73
      %s76 = sphi 0, %s75
      %s90 = sphi 0, %s76
      %s94 = sphi 0, %s94
      %s96 = sphi 0, %s94
      %s97 = sphi 0, %s96
      %s111 = sphi 0, %s97
      %s115 = sphi 0, %s115
      %s117 = sphi 0, %s115
      %s118 = sphi 0, %s117
      %s132 = sphi 0, %s118
      %s138 = sphi 0, %s140
      %s141 = sphi 0, %s138
      %s142 = sphi 0, %s141
      %s158 = sphi 0, %s142
    $region4: #{tpu_custom_call.1} parent=1 // loop_header_branch
      %21 = sbr.rel (%p19) target = $region8
    $region5: #{tpu_custom_call.1} parent=1 // loop_body
      %s23 = ssub.s32 %s18, 1
      %s24 = ssub.s32 %s18, 2
      %s25 = sadd.s32 %s18, 1
      %s26 = ssub.s32 %s18, %s25
      %p27 = scmp.eq.s32.totalorder %s26, 0
      %s29 = sadd.s32 %s28, 1
      %s30 = scalar_select %p27, %s28, %s29
      %p33 = pneg %p27
      %p34 = scmp.eq.s32.totalorder %s18, 1
      %p35 = por %p33, %p34
      %p36 = scmp.ne.s32.totalorder %s28, %s31
      %p37 = scmp.eq.s32.totalorder %s18, 0
      %p38 = por %p36, %p37
      %p39 = scmp.ne.s32.totalorder %s28, %s31
      %p40 = scmp.eq.s32.totalorder %s23, 1
      %p41 = por %p39, %p40
      %p42 = scmp.ne.s32.totalorder %s31, %s32
      %p43 = scmp.eq.s32.totalorder %s23, 0
      %p44 = por %p42, %p43
      %p45 = scmp.ne.s32.totalorder %s31, %s32
      %p46 = scmp.eq.s32.totalorder %s24, 1
      %p47 = por %p45, %p46
      %p49 = scmp.ne.s32.totalorder %s32, %s48
      %p50 = scmp.eq.s32.totalorder %s24, 0
      %p51 = por %p49, %p50
      %s53 = sadd.s32 %s52, 1
      %p56 = scmp.eq.s32.totalorder %s18, 1
      %p57 = scmp.ne.s32.totalorder %s52, %s54
      %p58 = scmp.eq.s32.totalorder %s18, 0
      %p59 = por %p57, %p58
      %p60 = scmp.ne.s32.totalorder %s52, %s54
      %p61 = scmp.eq.s32.totalorder %s23, 1
      %p62 = por %p60, %p61
      %p63 = scmp.ne.s32.totalorder %s54, %s55
      %p64 = scmp.eq.s32.totalorder %s23, 0
      %p65 = por %p63, %p64
      %p66 = scmp.ne.s32.totalorder %s54, %s55
      %p67 = scmp.eq.s32.totalorder %s24, 1
      %p68 = por %p66, %p67
      %p70 = scmp.ne.s32.totalorder %s55, %s69
      %p71 = scmp.eq.s32.totalorder %s24, 0
      %p72 = por %p70, %p71
      %s74 = sadd.s32 %s73, 1
      %p77 = scmp.eq.s32.totalorder %s18, 1
      %p78 = scmp.ne.s32.totalorder %s73, %s75
      %p79 = scmp.eq.s32.totalorder %s18, 0
      %p80 = por %p78, %p79
      %p81 = scmp.ne.s32.totalorder %s73, %s75
      %p82 = scmp.eq.s32.totalorder %s23, 1
      %p83 = por %p81, %p82
      %p84 = scmp.ne.s32.totalorder %s75, %s76
      %p85 = scmp.eq.s32.totalorder %s23, 0
      %p86 = por %p84, %p85
      %p87 = scmp.ne.s32.totalorder %s75, %s76
      %p88 = scmp.eq.s32.totalorder %s24, 1
      %p89 = por %p87, %p88
      %p91 = scmp.ne.s32.totalorder %s76, %s90
      %p92 = scmp.eq.s32.totalorder %s24, 0
      %p93 = por %p91, %p92
      %s95 = sadd.s32 %s94, 1
      %p98 = scmp.eq.s32.totalorder %s18, 1
      %p99 = scmp.ne.s32.totalorder %s94, %s96
      %p100 = scmp.eq.s32.totalorder %s18, 0
      %p101 = por %p99, %p100
      %p102 = scmp.ne.s32.totalorder %s94, %s96
      %p103 = scmp.eq.s32.totalorder %s23, 1
      %p104 = por %p102, %p103
      %p105 = scmp.ne.s32.totalorder %s96, %s97
      %p106 = scmp.eq.s32.totalorder %s23, 0
      %p107 = por %p105, %p106
      %p108 = scmp.ne.s32.totalorder %s96, %s97
      %p109 = scmp.eq.s32.totalorder %s24, 1
      %p110 = por %p108, %p109
      %p112 = scmp.ne.s32.totalorder %s97, %s111
      %p113 = scmp.eq.s32.totalorder %s24, 0
      %p114 = por %p112, %p113
      %s116 = sadd.s32 %s115, 1
      %p119 = scmp.eq.s32.totalorder %s18, 1
      %p120 = scmp.ne.s32.totalorder %s115, %s117
      %p121 = scmp.eq.s32.totalorder %s18, 0
      %p122 = por %p120, %p121
      %p123 = scmp.ne.s32.totalorder %s115, %s117
      %p124 = scmp.eq.s32.totalorder %s23, 1
      %p125 = por %p123, %p124
      %p126 = scmp.ne.s32.totalorder %s117, %s118
      %p127 = scmp.eq.s32.totalorder %s23, 0
      %p128 = por %p126, %p127
      %p129 = scmp.ne.s32.totalorder %s117, %s118
      %p130 = scmp.eq.s32.totalorder %s24, 1
      %p131 = por %p129, %p130
      %p133 = scmp.ne.s32.totalorder %s118, %s132
      %p134 = scmp.eq.s32.totalorder %s24, 0
      %p135 = por %p133, %p134
      %s136 = ssub.s32 %s18, %s25
      %p137 = scmp.eq.s32.totalorder %s136, 0
      %s139 = sadd.s32 %s138, 1
      %s140 = scalar_select %p137, %s138, %s139
      %p143 = pneg %p137
      %p144 = scmp.eq.s32.totalorder %s18, 1
      %p145 = por %p143, %p144
      %p146 = scmp.ne.s32.totalorder %s138, %s141
      %p147 = scmp.eq.s32.totalorder %s18, 0
      %p148 = por %p146, %p147
      %p149 = scmp.ne.s32.totalorder %s138, %s141
      %p150 = scmp.eq.s32.totalorder %s23, 1
      %p151 = por %p149, %p150
      %p152 = scmp.ne.s32.totalorder %s141, %s142
      %p153 = scmp.eq.s32.totalorder %s23, 0
      %p154 = por %p152, %p153
      %p155 = scmp.ne.s32.totalorder %s141, %s142
      %p156 = scmp.eq.s32.totalorder %s24, 1
      %p157 = por %p155, %p156
      %p159 = scmp.ne.s32.totalorder %s142, %s158
      %p160 = scmp.eq.s32.totalorder %s24, 0
      %p161 = por %p159, %p160
      %p162 = scmp.le.s32.totalorder 1, %s18
      %p163 = scmp.lt.s32.totalorder %s18, 3
      %p164 = pnand %p162, %p163
      %p165 = pneg %p164
      // Predicated region
      $region9: #{tpu_custom_call.1} parent=5 // pred_check
        _
      $region10: #{tpu_custom_call.1} parent=5 // pred_check_branch
        %167 = sbr.rel (%p164) target = $region12
      $region11: #{tpu_custom_call.1} parent=5 // pred_region
        %s168 = ssub.s32 %s18, 1
        // Predicated region
        $region13: #{tpu_custom_call.1} parent=11 // pred_check
          %p169 = pneg %p65
        $region14: #{tpu_custom_call.1} parent=11 // pred_check_branch
          %171 = sbr.rel (%p169) target = $region16
        $region15: #{tpu_custom_call.1} parent=11 // pred_region
          %s173 = ssub.s32 6912, 6912
          %174 = vsyncadd [#allocation6], %s173
          %s175 = sshll.u32 [#allocation5], 4
          %s176 = int_to_ptr.vmem [resolvable:$true] %s175
          %181 = dma.hbm_to_vmem [thread:$0]  %s1, 6912, %s176, [#allocation6], 128, 128, 8
        $region16: #{tpu_custom_call.1} parent=11 // pred_fallthru
          _
        // Predicated region
        $region17: #{tpu_custom_call.1} parent=11 // pred_check
          %p182 = pneg %p86
        $region18: #{tpu_custom_call.1} parent=11 // pred_check_branch
          %184 = sbr.rel (%p182) target = $region20
        $region19: #{tpu_custom_call.1} parent=11 // pred_region
          _
        $region20: #{tpu_custom_call.1} parent=11 // pred_fallthru
          _
        // Predicated region
        $region21: #{tpu_custom_call.1} parent=11 // pred_check
          %p185 = pneg %p107
        $region22: #{tpu_custom_call.1} parent=11 // pred_check_branch
          %187 = sbr.rel (%p185) target = $region24
        $region23: #{tpu_custom_call.1} parent=11 // pred_region
          %s189 = ssub.s32 6912, 6912
          %190 = vsyncadd [#allocation6], %s189
          %s191 = sshll.u32 [#allocation7], 4
          %s192 = int_to_ptr.vmem [resolvable:$true] %s191
          %197 = dma.hbm_to_vmem [thread:$0]  %s3, 6912, %s192, [#allocation6], 128, 128, 8
        $region24: #{tpu_custom_call.1} parent=11 // pred_fallthru
          _
        // Predicated region
        $region25: #{tpu_custom_call.1} parent=11 // pred_check
          %p198 = pneg %p128
        $region26: #{tpu_custom_call.1} parent=11 // pred_check_branch
          %200 = sbr.rel (%p198) target = $region28
        $region27: #{tpu_custom_call.1} parent=11 // pred_region
          _
        $region28: #{tpu_custom_call.1} parent=11 // pred_fallthru
          _
      $region12: #{tpu_custom_call.1} parent=5 // pred_fallthru
        _
      %p201 = scmp.lt.s32.totalorder %s18, 2
      // Predicated region
      $region29: #{tpu_custom_call.1} parent=5 // pred_check
        %p202 = pneg %p201
      $region30: #{tpu_custom_call.1} parent=5 // pred_check_branch
        %204 = sbr.rel (%p202) target = $region32
      $region31: #{tpu_custom_call.1} parent=5 // pred_region
        // Predicated region
        $region33: #{tpu_custom_call.1} parent=31 // pred_check
          %p205 = pneg %p38
        $region34: #{tpu_custom_call.1} parent=31 // pred_check_branch
          %207 = sbr.rel (%p205) target = $region36
        $region35: #{tpu_custom_call.1} parent=31 // pred_region
          %s208 = sand.u32 %s28, 1
          %s209 = scalar_lea.sflag [#allocation3], %s208
          %s210 = sand.u32 %s28, 1
          %s211 = smul.addr %s210, 16
          %s212 = scalar_lea.vmem [#allocation2], %s211
          %s214 = ssub.s32 256, 256
          %215 = vsyncadd %s209, %s214
          %s216 = smul.addr %s18, 2
          %s217 = smul.addr %s216, 128
          %s218 = scalar_lea.hbm %s0, %s217
          %s219 = sshll.u32 %s212, 4
          %s220 = int_to_ptr.vmem [resolvable:$true] %s219
          %225 = dma.hbm_to_vmem [thread:$0]  %s218, 256, %s220, %s209, 128, 128, 8
        $region36: #{tpu_custom_call.1} parent=31 // pred_fallthru
          _
      $region32: #{tpu_custom_call.1} parent=5 // pred_fallthru
        _
      %p226 = scmp.le.s32.totalorder 1, %s18
      %p227 = scmp.lt.s32.totalorder %s18, 3
      %p228 = pnand %p226, %p227
      %p229 = pneg %p228
      // Predicated region
      $region37: #{tpu_custom_call.1} parent=5 // pred_check
        _
      $region38: #{tpu_custom_call.1} parent=5 // pred_check_branch
        %231 = sbr.rel (%p228) target = $region40
      $region39: #{tpu_custom_call.1} parent=5 // pred_region
        %s232 = ssub.s32 %s18, 1
        %s233 = sand.u32 %s31, 1
        %s234 = scalar_lea.sflag [#allocation3], %s233
        %s235 = sand.u32 %s31, 1
        %s236 = smul.addr %s235, 16
        %s237 = scalar_lea.vmem [#allocation2], %s236
        // Predicated region
        $region41: #{tpu_custom_call.1} parent=39 // pred_check
          %p238 = pneg %p44
        $region42: #{tpu_custom_call.1} parent=39 // pred_check_branch
          %240 = sbr.rel (%p238) target = $region44
        $region43: #{tpu_custom_call.1} parent=39 // pred_region
          %241 = dma.done %s234, 256
        $region44: #{tpu_custom_call.1} parent=39 // pred_fallthru
          _
        // Predicated region
        $region45: #{tpu_custom_call.1} parent=39 // pred_check
          %p242 = pneg %p65
        $region46: #{tpu_custom_call.1} parent=39 // pred_check_branch
          %244 = sbr.rel (%p242) target = $region48
        $region47: #{tpu_custom_call.1} parent=39 // pred_region
          %245 = dma.done [#allocation6], 6912
        $region48: #{tpu_custom_call.1} parent=39 // pred_fallthru
          _
        // Predicated region
        $region49: #{tpu_custom_call.1} parent=39 // pred_check
          %p246 = pneg %p107
        $region50: #{tpu_custom_call.1} parent=39 // pred_check_branch
          %248 = sbr.rel (%p246) target = $region52
        $region51: #{tpu_custom_call.1} parent=39 // pred_region
          %249 = dma.done [#allocation6], 6912
        $region52: #{tpu_custom_call.1} parent=39 // pred_fallthru
          _
        %s250 = sand.u32 %s31, 1
        %s251 = scalar_lea.sflag [#allocation3], %s250
        %s252 = sand.u32 %s31, 1
        %s253 = smul.addr %s252, 16
        %s254 = scalar_lea.vmem [#allocation2], %s253
        %p255 = pneg %p44
        %p256 = pneg %p41
        %p257 = pneg %p65
        %p258 = pneg %p62
        %p259 = pneg %p86
        %p260 = pneg %p83
        %p261 = pneg %p107
        %p262 = pneg %p104
        %p263 = pneg %p128
        %p264 = pneg %p125
        %p265 = pneg %p154
        %p266 = pneg %p151
        %s267 = sand.u32 %s141, 1
        %s268 = scalar_lea.sflag [#allocation4], %s267
        %s269 = sand.u32 %s141, 1
        %s270 = smul.addr %s269, 16
        %s271 = scalar_lea.vmem [#allocation8], %s270
        %v272 = vld [vmem:[%s237] sm:$0xff]
        %v273 = vld [vmem:[%s237 + $0x8] sm:$0xff]
        %276 = vrot.lane.b32.xlu0 %v272, 8
        %v277 = vpop.permute.xlu0 %276
        %278 = vrot.lane.b32.xlu0 %v273, 8
        %v279 = vpop.permute.xlu0 %278
        %vm282 = vcmask 64512
        %v283 = vsel %vm282, 0.0, %v277
        %v284 = vsel %vm282, 0.0, %v279
        %v285 = vsel %vm282, %v277, 0.0
        %v286 = vsel %vm282, %v279, 0.0
        %vm291 = vcmask 1040384
        %v292 = vrot.slane %v283, 7
        %v293 = vrot.slane %v285, 7
        %v294 = vrot.slane %v284, 7
        %v295 = vsel %vm291, %v292, %v294
        %v296 = vrot.slane %v286, 7
        %v297 = vsel %vm291, %v293, %v296
        %v303 = vsel %vm291, 0.0, %v292
        %v304 = vsel %vm291, 0.0, %v293
        %v305 = vsel %vm291, %v294, 0.0
        %v306 = vsel %vm291, %v296, 0.0
        %v307 = vld [vmem:[#allocation5] sm:$0xff]
        %v308 = vld [vmem:[#allocation5 + $0x8] sm:$0xff]
        %v309 = vld [vmem:[#allocation5 + $0x10] sm:$0xff]
        %v310 = vld [vmem:[#allocation5 + $0x18] sm:$0xff]
        %v311 = vld [vmem:[#allocation5 + $0x20] sm:$0xff]
        %v312 = vld [vmem:[#allocation5 + $0x28] sm:$0xff]
        %v313 = vld [vmem:[#allocation5 + $0x30] sm:$0xff]
        %v314 = vld [vmem:[#allocation5 + $0x38] sm:$0xff]
        %v315 = vld [vmem:[#allocation5 + $0x40] sm:$0xff]
        %v316 = vld [vmem:[#allocation5 + $0x48] sm:$0xff]
        %v317 = vld [vmem:[#allocation5 + $0x50] sm:$0xff]
        %v318 = vld [vmem:[#allocation5 + $0x58] sm:$0xff]
        %v319 = vld [vmem:[#allocation5 + $0x60] sm:$0xff]
        %v320 = vld [vmem:[#allocation5 + $0x68] sm:$0xff]
        %v321 = vld [vmem:[#allocation5 + $0x70] sm:$0xff]
        %v322 = vld [vmem:[#allocation5 + $0x78] sm:$0xff]
        %v323 = vld [vmem:[#allocation5 + $0x80] sm:$0xff]
        %v324 = vld [vmem:[#allocation5 + $0x88] sm:$0xff]
        %s325 = scalar_lea.vmem [#allocation5], 144
        %v326 = vld [vmem:[%s325] sm:$0xff]
        %v327 = vld [vmem:[%s325 + $0x8] sm:$0xff]
        %v328 = vld [vmem:[%s325 + $0x10] sm:$0xff]
        %v329 = vld [vmem:[%s325 + $0x18] sm:$0xff]
        %v330 = vld [vmem:[%s325 + $0x20] sm:$0xff]
        %v331 = vld [vmem:[%s325 + $0x28] sm:$0xff]
        %v332 = vld [vmem:[%s325 + $0x30] sm:$0xff]
        %v333 = vld [vmem:[%s325 + $0x38] sm:$0xff]
        %v334 = vld [vmem:[%s325 + $0x40] sm:$0xff]
        %v335 = vld [vmem:[%s325 + $0x48] sm:$0xff]
        %v336 = vld [vmem:[%s325 + $0x50] sm:$0xff]
        %v337 = vld [vmem:[%s325 + $0x58] sm:$0xff]
        %v338 = vld [vmem:[%s325 + $0x60] sm:$0xff]
        %v339 = vld [vmem:[%s325 + $0x68] sm:$0xff]
        %v340 = vld [vmem:[%s325 + $0x70] sm:$0xff]
        %v341 = vld [vmem:[%s325 + $0x78] sm:$0xff]
        %v342 = vld [vmem:[%s325 + $0x80] sm:$0xff]
        %v343 = vld [vmem:[%s325 + $0x88] sm:$0xff]
        %vm348 = vcmask 1046528
        %v349 = vrot.slane %v303, 1
        %v350 = vrot.slane %v295, 1
        %v351 = vsel %vm348, %v349, %v350
        %v352 = vrot.slane %v304, 1
        %v353 = vrot.slane %v297, 1
        %v354 = vsel %vm348, %v352, %v353
        %v355 = vrot.slane %v305, 1
        %v356 = vsel %vm348, %v350, %v355
        %v357 = vrot.slane %v306, 1
        %v358 = vsel %vm348, %v353, %v357
        %vm361 = vcmask 130048
        %v362 = vsel %vm361, %v354, 0
        %v364 = vsel %vm361, %v358, 0
        %366 = vmatprep.subr.mxu0 0.0
        %367 = vmatpush1.msra.mxu0 %v341
        %368 = vmatprep.subr.mxu0 0.0
        %369 = vmatpush1.msra.mxu0 %v340
        %370 = vmatprep.subr.mxu0 0.0
        %371 = vmatpush1.msra.mxu0 %v339
        %372 = vmatprep.subr.mxu0 0.0
        %373 = vmatpush1.msra.mxu0 %v338
        %374 = vmatprep.subr.mxu0 0.0
        %375 = vmatpush1.msra.mxu0 %v337
        %376 = vmatprep.subr.mxu0 0.0
        %377 = vmatpush1.msra.mxu0 %v336
        %378 = vmatprep.subr.mxu0 0.0
        %379 = vmatpush1.msra.mxu0 %v335
        %380 = vmatprep.subr.mxu0 0.0
        %381 = vmatpush1.msra.mxu0 %v334
        %382 = vmatprep.subr.mxu0 0.0
        %383 = vmatpush1.msra.mxu0 %v333
        %384 = vmatprep.subr.mxu0 0.0
        %385 = vmatpush1.msra.mxu0 %v332
        %386 = vmatprep.subr.mxu0 0.0
        %387 = vmatpush1.msra.mxu0 %v331
        %388 = vmatprep.subr.mxu0 0.0
        %389 = vmatpush1.msra.mxu0 %v330
        %390 = vmatprep.subr.mxu0 0.0
        %391 = vmatpush1.msra.mxu0 %v329
        %392 = vmatprep.subr.mxu0 0.0
        %393 = vmatpush1.msra.mxu0 %v328
        %394 = vmatprep.subr.mxu0 0.0
        %395 = vmatpush1.msra.mxu0 %v327
        %396 = vmatprep.subr.mxu0 0.0
        %397 = vmatpush1.msra.mxu0 %v326
        %398 = vmatprep.subr.mxu0 0.0
        %399 = vmatpush2.msra.mxu0 0.0
        %400 = vmatprep.subr.mxu0 0.0
        %401 = vmatpush2.msra.mxu0 0.0
        %402 = vmatprep.subr.mxu0 0.0
        %403 = vmatpush2.msra.mxu0 0.0
        %404 = vmatprep.subr.mxu0 0.0
        %405 = vmatpush2.msra.mxu0 0.0
        %406 = vmatprep.subr.mxu0 0.0
        %407 = vmatpush2.msra.mxu0 0.0
        %408 = vmatprep.subr.mxu0 0.0
        %409 = vmatpush2.msra.mxu0 0.0
        %410 = vmatprep.subr.mxu0 0.0
        %411 = vmatpush2.msra.mxu0 0.0
        %412 = vmatprep.subr.mxu0 0.0
        %413 = vmatpush2.msra.mxu0 0.0
        %414 = vmatprep.subr.mxu0 0.0
        %415 = vmatpush2.msra.mxu0 0.0
        %416 = vmatprep.subr.mxu0 0.0
        %417 = vmatpush2.msra.mxu0 0.0
        %418 = vmatprep.subr.mxu0 0.0
        %419 = vmatpush2.msra.mxu0 0.0
        %420 = vmatprep.subr.mxu0 0.0
        %421 = vmatpush2.msra.mxu0 0.0
        %422 = vmatprep.subr.mxu0 0.0
        %423 = vmatpush2.msra.mxu0 0.0
        %424 = vmatprep.subr.mxu0 0.0
        %425 = vmatpush2.msra.mxu0 0.0
        %426 = vmatprep.subr.mxu0 0.0
        %427 = vmatpush2.msra.mxu0 %v343
        %428 = vmatprep.subr.mxu0 0.0
        %429 = vmatpush2.msra.mxu0 %v342
        %430 = vmatprep.mubr.f32.mxu0 %v362
        %431 = vmatmul.mubr.f32.gmra.mxu0 %v351
        %v432 = vpop.f32.mrf.mxu0
        %v433 = vadd.f32 0.0, %v432
        %v434 = vpop.f32.mrf.mxu0
        %435 = vmatprep.mubr.f32.mxu0 %v364
        %436 = vmatmul.mubr.f32.gmra.mxu0 %v356
        %v437 = vpop.f32.mrf.mxu0
        %v438 = vadd.f32 0.0, %v437
        %v439 = vpop.f32.mrf.mxu0
        %440 = vdwg.mxu0
        %v441 = vsel %vm361, %v304, 0
        %v443 = vsel %vm361, %v297, 0
        %445 = vmatprep.subr.mxu0 0.0
        %446 = vmatpush1.msra.mxu0 %v322
        %447 = vmatprep.subr.mxu0 0.0
        %448 = vmatpush1.msra.mxu0 %v321
        %449 = vmatprep.subr.mxu0 0.0
        %450 = vmatpush1.msra.mxu0 %v320
        %451 = vmatprep.subr.mxu0 0.0
        %452 = vmatpush1.msra.mxu0 %v319
        %453 = vmatprep.subr.mxu0 0.0
        %454 = vmatpush1.msra.mxu0 %v318
        %455 = vmatprep.subr.mxu0 0.0
        %456 = vmatpush1.msra.mxu0 %v317
        %457 = vmatprep.subr.mxu0 0.0
        %458 = vmatpush1.msra.mxu0 %v316
        %459 = vmatprep.subr.mxu0 0.0
        %460 = vmatpush1.msra.mxu0 %v315
        %461 = vmatprep.subr.mxu0 0.0
        %462 = vmatpush1.msra.mxu0 %v314
        %463 = vmatprep.subr.mxu0 0.0
        %464 = vmatpush1.msra.mxu0 %v313
        %465 = vmatprep.subr.mxu0 0.0
        %466 = vmatpush1.msra.mxu0 %v312
        %467 = vmatprep.subr.mxu0 0.0
        %468 = vmatpush1.msra.mxu0 %v311
        %469 = vmatprep.subr.mxu0 0.0
        %470 = vmatpush1.msra.mxu0 %v310
        %471 = vmatprep.subr.mxu0 0.0
        %472 = vmatpush1.msra.mxu0 %v309
        %473 = vmatprep.subr.mxu0 0.0
        %474 = vmatpush1.msra.mxu0 %v308
        %475 = vmatprep.subr.mxu0 0.0
        %476 = vmatpush1.msra.mxu0 %v307
        %477 = vmatprep.subr.mxu0 0.0
        %478 = vmatpush2.msra.mxu0 0.0
        %479 = vmatprep.subr.mxu0 0.0
        %480 = vmatpush2.msra.mxu0 0.0
        %481 = vmatprep.subr.mxu0 0.0
        %482 = vmatpush2.msra.mxu0 0.0
        %483 = vmatprep.subr.mxu0 0.0
        %484 = vmatpush2.msra.mxu0 0.0
        %485 = vmatprep.subr.mxu0 0.0
        %486 = vmatpush2.msra.mxu0 0.0
        %487 = vmatprep.subr.mxu0 0.0
        %488 = vmatpush2.msra.mxu0 0.0
        %489 = vmatprep.subr.mxu0 0.0
        %490 = vmatpush2.msra.mxu0 0.0
        %491 = vmatprep.subr.mxu0 0.0
        %492 = vmatpush2.msra.mxu0 0.0
        %493 = vmatprep.subr.mxu0 0.0
        %494 = vmatpush2.msra.mxu0 0.0
        %495 = vmatprep.subr.mxu0 0.0
        %496 = vmatpush2.msra.mxu0 0.0
        %497 = vmatprep.subr.mxu0 0.0
        %498 = vmatpush2.msra.mxu0 0.0
        %499 = vmatprep.subr.mxu0 0.0
        %500 = vmatpush2.msra.mxu0 0.0
        %501 = vmatprep.subr.mxu0 0.0
        %502 = vmatpush2.msra.mxu0 0.0
        %503 = vmatprep.subr.mxu0 0.0
        %504 = vmatpush2.msra.mxu0 0.0
        %505 = vmatprep.subr.mxu0 0.0
        %506 = vmatpush2.msra.mxu0 %v324
        %507 = vmatprep.subr.mxu0 0.0
        %508 = vmatpush2.msra.mxu0 %v323
        %509 = vmatprep.mubr.f32.mxu0 %v441
        %510 = vmatmul.mubr.f32.gmra.mxu0 %v303
        %v511 = vpop.f32.mrf.mxu0
        %v512 = vadd.f32 %v433, %v511
        %v513 = vpop.f32.mrf.mxu0
        %514 = vmatprep.mubr.f32.mxu0 %v443
        %515 = vmatmul.mubr.f32.gmra.mxu0 %v295
        %v516 = vpop.f32.mrf.mxu0
        %v517 = vadd.f32 %v438, %v516
        %v518 = vpop.f32.mrf.mxu0
        %519 = vdwg.mxu0
        %s520 = scalar_lea.vmem [#allocation5], 288
        %v521 = vld [vmem:[%s520] sm:$0xff]
        %v522 = vld [vmem:[%s520 + $0x8] sm:$0xff]
        %v523 = vld [vmem:[%s520 + $0x10] sm:$0xff]
        %v524 = vld [vmem:[%s520 + $0x18] sm:$0xff]
        %v525 = vld [vmem:[%s520 + $0x20] sm:$0xff]
        %v526 = vld [vmem:[%s520 + $0x28] sm:$0xff]
        %v527 = vld [vmem:[%s520 + $0x30] sm:$0xff]
        %v528 = vld [vmem:[%s520 + $0x38] sm:$0xff]
        %v529 = vld [vmem:[%s520 + $0x40] sm:$0xff]
        %v530 = vld [vmem:[%s520 + $0x48] sm:$0xff]
        %v531 = vld [vmem:[%s520 + $0x50] sm:$0xff]
        %v532 = vld [vmem:[%s520 + $0x58] sm:$0xff]
        %v533 = vld [vmem:[%s520 + $0x60] sm:$0xff]
        %v534 = vld [vmem:[%s520 + $0x68] sm:$0xff]
        %v535 = vld [vmem:[%s520 + $0x70] sm:$0xff]
        %v536 = vld [vmem:[%s520 + $0x78] sm:$0xff]
        %v537 = vld [vmem:[%s520 + $0x80] sm:$0xff]
        %v538 = vld [vmem:[%s520 + $0x88] sm:$0xff]
        %vm539 = vcmask 1045504
        %v540 = vrot.slane %v303, 2
        %v541 = vrot.slane %v295, 2
        %v542 = vsel %vm539, %v540, %v541
        %v543 = vrot.slane %v304, 2
        %v544 = vrot.slane %v297, 2
        %v545 = vsel %vm539, %v543, %v544
        %v546 = vrot.slane %v305, 2
        %v547 = vsel %vm539, %v541, %v546
        %v548 = vrot.slane %v306, 2
        %v549 = vsel %vm539, %v544, %v548
        %v552 = vsel %vm361, %v545, 0
        %v554 = vsel %vm361, %v549, 0
        %556 = vmatprep.subr.mxu0 0.0
        %557 = vmatpush1.msra.mxu0 %v536
        %558 = vmatprep.subr.mxu0 0.0
        %559 = vmatpush1.msra.mxu0 %v535
        %560 = vmatprep.subr.mxu0 0.0
        %561 = vmatpush1.msra.mxu0 %v534
        %562 = vmatprep.subr.mxu0 0.0
        %563 = vmatpush1.msra.mxu0 %v533
        %564 = vmatprep.subr.mxu0 0.0
        %565 = vmatpush1.msra.mxu0 %v532
        %566 = vmatprep.subr.mxu0 0.0
        %567 = vmatpush1.msra.mxu0 %v531
        %568 = vmatprep.subr.mxu0 0.0
        %569 = vmatpush1.msra.mxu0 %v530
        %570 = vmatprep.subr.mxu0 0.0
        %571 = vmatpush1.msra.mxu0 %v529
        %572 = vmatprep.subr.mxu0 0.0
        %573 = vmatpush1.msra.mxu0 %v528
        %574 = vmatprep.subr.mxu0 0.0
        %575 = vmatpush1.msra.mxu0 %v527
        %576 = vmatprep.subr.mxu0 0.0
        %577 = vmatpush1.msra.mxu0 %v526
        %578 = vmatprep.subr.mxu0 0.0
        %579 = vmatpush1.msra.mxu0 %v525
        %580 = vmatprep.subr.mxu0 0.0
        %581 = vmatpush1.msra.mxu0 %v524
        %582 = vmatprep.subr.mxu0 0.0
        %583 = vmatpush1.msra.mxu0 %v523
        %584 = vmatprep.subr.mxu0 0.0
        %585 = vmatpush1.msra.mxu0 %v522
        %586 = vmatprep.subr.mxu0 0.0
        %587 = vmatpush1.msra.mxu0 %v521
        %588 = vmatprep.subr.mxu0 0.0
        %589 = vmatpush2.msra.mxu0 0.0
        %590 = vmatprep.subr.mxu0 0.0
        %591 = vmatpush2.msra.mxu0 0.0
        %592 = vmatprep.subr.mxu0 0.0
        %593 = vmatpush2.msra.mxu0 0.0
        %594 = vmatprep.subr.mxu0 0.0
        %595 = vmatpush2.msra.mxu0 0.0
        %596 = vmatprep.subr.mxu0 0.0
        %597 = vmatpush2.msra.mxu0 0.0
        %598 = vmatprep.subr.mxu0 0.0
        %599 = vmatpush2.msra.mxu0 0.0
        %600 = vmatprep.subr.mxu0 0.0
        %601 = vmatpush2.msra.mxu0 0.0
        %602 = vmatprep.subr.mxu0 0.0
        %603 = vmatpush2.msra.mxu0 0.0
        %604 = vmatprep.subr.mxu0 0.0
        %605 = vmatpush2.msra.mxu0 0.0
        %606 = vmatprep.subr.mxu0 0.0
        %607 = vmatpush2.msra.mxu0 0.0
        %608 = vmatprep.subr.mxu0 0.0
        %609 = vmatpush2.msra.mxu0 0.0
        %610 = vmatprep.subr.mxu0 0.0
        %611 = vmatpush2.msra.mxu0 0.0
        %612 = vmatprep.subr.mxu0 0.0
        %613 = vmatpush2.msra.mxu0 0.0
        %614 = vmatprep.subr.mxu0 0.0
        %615 = vmatpush2.msra.mxu0 0.0
        %616 = vmatprep.subr.mxu0 0.0
        %617 = vmatpush2.msra.mxu0 %v538
        %618 = vmatprep.subr.mxu0 0.0
        %619 = vmatpush2.msra.mxu0 %v537
        %620 = vmatprep.mubr.f32.mxu0 %v552
        %621 = vmatmul.mubr.f32.gmra.mxu0 %v542
        %v622 = vpop.f32.mrf.mxu0
        %v623 = vadd.f32 0.0, %v622
        %v624 = vpop.f32.mrf.mxu0
        %625 = vmatprep.mubr.f32.mxu0 %v554
        %626 = vmatmul.mubr.f32.gmra.mxu0 %v547
        %v627 = vpop.f32.mrf.mxu0
        %v628 = vadd.f32 0.0, %v627
        %v629 = vpop.f32.mrf.mxu0
        %630 = vdwg.mxu0
        %v631 = vadd.f32 %v512, %v623
        %v632 = vadd.f32 %v517, %v628
        %v633 = vld [vmem:[%s2] sm:$0x1]
        %v635 = vlaneseq
        %v636 = vshrl.u32 %v635, 7
        %v637 = vsub.s32 0, %v636
        %v638 = vrot.slane %v633, %v637
        %v640 = vadd.f32 %v631, %v638
        %v641 = vadd.f32 %v632, %v638
        %vm642 = vcmp.gt.f32.partialorder %v640, 0.0
        %vm643 = vcmp.gt.f32.partialorder %v641, 0.0
        %v644 = vmul.f32 %v640, 0.01
        %v645 = vmul.f32 %v641, 0.01
        %v646 = vsel %vm642, %v640, %v644
        %v647 = vsel %vm643, %v641, %v645
        %650 = vrot.lane.b32.xlu0 %v646, 8
        %v651 = vpop.permute.xlu0 %650
        %652 = vrot.lane.b32.xlu0 %v647, 8
        %v653 = vpop.permute.xlu0 %652
        %v656 = vsel %vm282, 0.0, %v651
        %v657 = vsel %vm282, 0.0, %v653
        %v658 = vsel %vm282, %v651, 0.0
        %v659 = vsel %vm282, %v653, 0.0
        %v664 = vrot.slane %v656, 7
        %v665 = vrot.slane %v658, 7
        %v666 = vrot.slane %v657, 7
        %v667 = vsel %vm291, %v664, %v666
        %v668 = vrot.slane %v659, 7
        %v669 = vsel %vm291, %v665, %v668
        %v675 = vsel %vm291, 0.0, %v664
        %v676 = vsel %vm291, 0.0, %v665
        %v677 = vsel %vm291, %v666, 0.0
        %v678 = vsel %vm291, %v668, 0.0
        %v679 = vld [vmem:[#allocation7] sm:$0xff]
        %v680 = vld [vmem:[#allocation7 + $0x8] sm:$0xff]
        %v681 = vld [vmem:[#allocation7 + $0x10] sm:$0xff]
        %v682 = vld [vmem:[#allocation7 + $0x18] sm:$0xff]
        %v683 = vld [vmem:[#allocation7 + $0x20] sm:$0xff]
        %v684 = vld [vmem:[#allocation7 + $0x28] sm:$0xff]
        %v685 = vld [vmem:[#allocation7 + $0x30] sm:$0xff]
        %v686 = vld [vmem:[#allocation7 + $0x38] sm:$0xff]
        %v687 = vld [vmem:[#allocation7 + $0x40] sm:$0xff]
        %v688 = vld [vmem:[#allocation7 + $0x48] sm:$0xff]
        %v689 = vld [vmem:[#allocation7 + $0x50] sm:$0xff]
        %v690 = vld [vmem:[#allocation7 + $0x58] sm:$0xff]
        %v691 = vld [vmem:[#allocation7 + $0x60] sm:$0xff]
        %v692 = vld [vmem:[#allocation7 + $0x68] sm:$0xff]
        %v693 = vld [vmem:[#allocation7 + $0x70] sm:$0xff]
        %v694 = vld [vmem:[#allocation7 + $0x78] sm:$0xff]
        %v695 = vld [vmem:[#allocation7 + $0x80] sm:$0xff]
        %v696 = vld [vmem:[#allocation7 + $0x88] sm:$0xff]
        %s697 = scalar_lea.vmem [#allocation7], 144
        %v698 = vld [vmem:[%s697] sm:$0xff]
        %v699 = vld [vmem:[%s697 + $0x8] sm:$0xff]
        %v700 = vld [vmem:[%s697 + $0x10] sm:$0xff]
        %v701 = vld [vmem:[%s697 + $0x18] sm:$0xff]
        %v702 = vld [vmem:[%s697 + $0x20] sm:$0xff]
        %v703 = vld [vmem:[%s697 + $0x28] sm:$0xff]
        %v704 = vld [vmem:[%s697 + $0x30] sm:$0xff]
        %v705 = vld [vmem:[%s697 + $0x38] sm:$0xff]
        %v706 = vld [vmem:[%s697 + $0x40] sm:$0xff]
        %v707 = vld [vmem:[%s697 + $0x48] sm:$0xff]
        %v708 = vld [vmem:[%s697 + $0x50] sm:$0xff]
        %v709 = vld [vmem:[%s697 + $0x58] sm:$0xff]
        %v710 = vld [vmem:[%s697 + $0x60] sm:$0xff]
        %v711 = vld [vmem:[%s697 + $0x68] sm:$0xff]
        %v712 = vld [vmem:[%s697 + $0x70] sm:$0xff]
        %v713 = vld [vmem:[%s697 + $0x78] sm:$0xff]
        %v714 = vld [vmem:[%s697 + $0x80] sm:$0xff]
        %v715 = vld [vmem:[%s697 + $0x88] sm:$0xff]
        %v720 = vrot.slane %v675, 1
        %v721 = vrot.slane %v667, 1
        %v722 = vsel %vm348, %v720, %v721
        %v723 = vrot.slane %v676, 1
        %v724 = vrot.slane %v669, 1
        %v725 = vsel %vm348, %v723, %v724
        %v726 = vrot.slane %v677, 1
        %v727 = vsel %vm348, %v721, %v726
        %v728 = vrot.slane %v678, 1
        %v729 = vsel %vm348, %v724, %v728
        %v732 = vsel %vm361, %v725, 0
        %v734 = vsel %vm361, %v729, 0
        %736 = vmatprep.subr.mxu0 0.0
        %737 = vmatpush1.msra.mxu0 %v713
        %738 = vmatprep.subr.mxu0 0.0
        %739 = vmatpush1.msra.mxu0 %v712
        %740 = vmatprep.subr.mxu0 0.0
        %741 = vmatpush1.msra.mxu0 %v711
        %742 = vmatprep.subr.mxu0 0.0
        %743 = vmatpush1.msra.mxu0 %v710
        %744 = vmatprep.subr.mxu0 0.0
        %745 = vmatpush1.msra.mxu0 %v709
        %746 = vmatprep.subr.mxu0 0.0
        %747 = vmatpush1.msra.mxu0 %v708
        %748 = vmatprep.subr.mxu0 0.0
        %749 = vmatpush1.msra.mxu0 %v707
        %750 = vmatprep.subr.mxu0 0.0
        %751 = vmatpush1.msra.mxu0 %v706
        %752 = vmatprep.subr.mxu0 0.0
        %753 = vmatpush1.msra.mxu0 %v705
        %754 = vmatprep.subr.mxu0 0.0
        %755 = vmatpush1.msra.mxu0 %v704
        %756 = vmatprep.subr.mxu0 0.0
        %757 = vmatpush1.msra.mxu0 %v703
        %758 = vmatprep.subr.mxu0 0.0
        %759 = vmatpush1.msra.mxu0 %v702
        %760 = vmatprep.subr.mxu0 0.0
        %761 = vmatpush1.msra.mxu0 %v701
        %762 = vmatprep.subr.mxu0 0.0
        %763 = vmatpush1.msra.mxu0 %v700
        %764 = vmatprep.subr.mxu0 0.0
        %765 = vmatpush1.msra.mxu0 %v699
        %766 = vmatprep.subr.mxu0 0.0
        %767 = vmatpush1.msra.mxu0 %v698
        %768 = vmatprep.subr.mxu0 0.0
        %769 = vmatpush2.msra.mxu0 0.0
        %770 = vmatprep.subr.mxu0 0.0
        %771 = vmatpush2.msra.mxu0 0.0
        %772 = vmatprep.subr.mxu0 0.0
        %773 = vmatpush2.msra.mxu0 0.0
        %774 = vmatprep.subr.mxu0 0.0
        %775 = vmatpush2.msra.mxu0 0.0
        %776 = vmatprep.subr.mxu0 0.0
        %777 = vmatpush2.msra.mxu0 0.0
        %778 = vmatprep.subr.mxu0 0.0
        %779 = vmatpush2.msra.mxu0 0.0
        %780 = vmatprep.subr.mxu0 0.0
        %781 = vmatpush2.msra.mxu0 0.0
        %782 = vmatprep.subr.mxu0 0.0
        %783 = vmatpush2.msra.mxu0 0.0
        %784 = vmatprep.subr.mxu0 0.0
        %785 = vmatpush2.msra.mxu0 0.0
        %786 = vmatprep.subr.mxu0 0.0
        %787 = vmatpush2.msra.mxu0 0.0
        %788 = vmatprep.subr.mxu0 0.0
        %789 = vmatpush2.msra.mxu0 0.0
        %790 = vmatprep.subr.mxu0 0.0
        %791 = vmatpush2.msra.mxu0 0.0
        %792 = vmatprep.subr.mxu0 0.0
        %793 = vmatpush2.msra.mxu0 0.0
        %794 = vmatprep.subr.mxu0 0.0
        %795 = vmatpush2.msra.mxu0 0.0
        %796 = vmatprep.subr.mxu0 0.0
        %797 = vmatpush2.msra.mxu0 %v715
        %798 = vmatprep.subr.mxu0 0.0
        %799 = vmatpush2.msra.mxu0 %v714
        %800 = vmatprep.mubr.f32.mxu0 %v732
        %801 = vmatmul.mubr.f32.gmra.mxu0 %v722
        %v802 = vpop.f32.mrf.mxu0
        %v803 = vadd.f32 0.0, %v802
        %v804 = vpop.f32.mrf.mxu0
        %805 = vmatprep.mubr.f32.mxu0 %v734
        %806 = vmatmul.mubr.f32.gmra.mxu0 %v727
        %v807 = vpop.f32.mrf.mxu0
        %v808 = vadd.f32 0.0, %v807
        %v809 = vpop.f32.mrf.mxu0
        %810 = vdwg.mxu0
        %v811 = vsel %vm361, %v676, 0
        %v813 = vsel %vm361, %v669, 0
        %815 = vmatprep.subr.mxu0 0.0
        %816 = vmatpush1.msra.mxu0 %v694
        %817 = vmatprep.subr.mxu0 0.0
        %818 = vmatpush1.msra.mxu0 %v693
        %819 = vmatprep.subr.mxu0 0.0
        %820 = vmatpush1.msra.mxu0 %v692
        %821 = vmatprep.subr.mxu0 0.0
        %822 = vmatpush1.msra.mxu0 %v691
        %823 = vmatprep.subr.mxu0 0.0
        %824 = vmatpush1.msra.mxu0 %v690
        %825 = vmatprep.subr.mxu0 0.0
        %826 = vmatpush1.msra.mxu0 %v689
        %827 = vmatprep.subr.mxu0 0.0
        %828 = vmatpush1.msra.mxu0 %v688
        %829 = vmatprep.subr.mxu0 0.0
        %830 = vmatpush1.msra.mxu0 %v687
        %831 = vmatprep.subr.mxu0 0.0
        %832 = vmatpush1.msra.mxu0 %v686
        %833 = vmatprep.subr.mxu0 0.0
        %834 = vmatpush1.msra.mxu0 %v685
        %835 = vmatprep.subr.mxu0 0.0
        %836 = vmatpush1.msra.mxu0 %v684
        %837 = vmatprep.subr.mxu0 0.0
        %838 = vmatpush1.msra.mxu0 %v683
        %839 = vmatprep.subr.mxu0 0.0
        %840 = vmatpush1.msra.mxu0 %v682
        %841 = vmatprep.subr.mxu0 0.0
        %842 = vmatpush1.msra.mxu0 %v681
        %843 = vmatprep.subr.mxu0 0.0
        %844 = vmatpush1.msra.mxu0 %v680
        %845 = vmatprep.subr.mxu0 0.0
        %846 = vmatpush1.msra.mxu0 %v679
        %847 = vmatprep.subr.mxu0 0.0
        %848 = vmatpush2.msra.mxu0 0.0
        %849 = vmatprep.subr.mxu0 0.0
        %850 = vmatpush2.msra.mxu0 0.0
        %851 = vmatprep.subr.mxu0 0.0
        %852 = vmatpush2.msra.mxu0 0.0
        %853 = vmatprep.subr.mxu0 0.0
        %854 = vmatpush2.msra.mxu0 0.0
        %855 = vmatprep.subr.mxu0 0.0
        %856 = vmatpush2.msra.mxu0 0.0
        %857 = vmatprep.subr.mxu0 0.0
        %858 = vmatpush2.msra.mxu0 0.0
        %859 = vmatprep.subr.mxu0 0.0
        %860 = vmatpush2.msra.mxu0 0.0
        %861 = vmatprep.subr.mxu0 0.0
        %862 = vmatpush2.msra.mxu0 0.0
        %863 = vmatprep.subr.mxu0 0.0
        %864 = vmatpush2.msra.mxu0 0.0
        %865 = vmatprep.subr.mxu0 0.0
        %866 = vmatpush2.msra.mxu0 0.0
        %867 = vmatprep.subr.mxu0 0.0
        %868 = vmatpush2.msra.mxu0 0.0
        %869 = vmatprep.subr.mxu0 0.0
        %870 = vmatpush2.msra.mxu0 0.0
        %871 = vmatprep.subr.mxu0 0.0
        %872 = vmatpush2.msra.mxu0 0.0
        %873 = vmatprep.subr.mxu0 0.0
        %874 = vmatpush2.msra.mxu0 0.0
        %875 = vmatprep.subr.mxu0 0.0
        %876 = vmatpush2.msra.mxu0 %v696
        %877 = vmatprep.subr.mxu0 0.0
        %878 = vmatpush2.msra.mxu0 %v695
        %879 = vmatprep.mubr.f32.mxu0 %v811
        %880 = vmatmul.mubr.f32.gmra.mxu0 %v675
        %v881 = vpop.f32.mrf.mxu0
        %v882 = vadd.f32 %v803, %v881
        %v883 = vpop.f32.mrf.mxu0
        %884 = vmatprep.mubr.f32.mxu0 %v813
        %885 = vmatmul.mubr.f32.gmra.mxu0 %v667
        %v886 = vpop.f32.mrf.mxu0
        %v887 = vadd.f32 %v808, %v886
        %v888 = vpop.f32.mrf.mxu0
        %889 = vdwg.mxu0
        %s890 = scalar_lea.vmem [#allocation7], 288
        %v891 = vld [vmem:[%s890] sm:$0xff]
        %v892 = vld [vmem:[%s890 + $0x8] sm:$0xff]
        %v893 = vld [vmem:[%s890 + $0x10] sm:$0xff]
        %v894 = vld [vmem:[%s890 + $0x18] sm:$0xff]
        %v895 = vld [vmem:[%s890 + $0x20] sm:$0xff]
        %v896 = vld [vmem:[%s890 + $0x28] sm:$0xff]
        %v897 = vld [vmem:[%s890 + $0x30] sm:$0xff]
        %v898 = vld [vmem:[%s890 + $0x38] sm:$0xff]
        %v899 = vld [vmem:[%s890 + $0x40] sm:$0xff]
        %v900 = vld [vmem:[%s890 + $0x48] sm:$0xff]
        %v901 = vld [vmem:[%s890 + $0x50] sm:$0xff]
        %v902 = vld [vmem:[%s890 + $0x58] sm:$0xff]
        %v903 = vld [vmem:[%s890 + $0x60] sm:$0xff]
        %v904 = vld [vmem:[%s890 + $0x68] sm:$0xff]
        %v905 = vld [vmem:[%s890 + $0x70] sm:$0xff]
        %v906 = vld [vmem:[%s890 + $0x78] sm:$0xff]
        %v907 = vld [vmem:[%s890 + $0x80] sm:$0xff]
        %v908 = vld [vmem:[%s890 + $0x88] sm:$0xff]
        %v909 = vrot.slane %v675, 2
        %v910 = vrot.slane %v667, 2
        %v911 = vsel %vm539, %v909, %v910
        %v912 = vrot.slane %v676, 2
        %v913 = vrot.slane %v669, 2
        %v914 = vsel %vm539, %v912, %v913
        %v915 = vrot.slane %v677, 2
        %v916 = vsel %vm539, %v910, %v915
        %v917 = vrot.slane %v678, 2
        %v918 = vsel %vm539, %v913, %v917
        %v921 = vsel %vm361, %v914, 0
        %v923 = vsel %vm361, %v918, 0
        %925 = vmatprep.subr.mxu0 0.0
        %926 = vmatpush1.msra.mxu0 %v906
        %927 = vmatprep.subr.mxu0 0.0
        %928 = vmatpush1.msra.mxu0 %v905
        %929 = vmatprep.subr.mxu0 0.0
        %930 = vmatpush1.msra.mxu0 %v904
        %931 = vmatprep.subr.mxu0 0.0
        %932 = vmatpush1.msra.mxu0 %v903
        %933 = vmatprep.subr.mxu0 0.0
        %934 = vmatpush1.msra.mxu0 %v902
        %935 = vmatprep.subr.mxu0 0.0
        %936 = vmatpush1.msra.mxu0 %v901
        %937 = vmatprep.subr.mxu0 0.0
        %938 = vmatpush1.msra.mxu0 %v900
        %939 = vmatprep.subr.mxu0 0.0
        %940 = vmatpush1.msra.mxu0 %v899
        %941 = vmatprep.subr.mxu0 0.0
        %942 = vmatpush1.msra.mxu0 %v898
        %943 = vmatprep.subr.mxu0 0.0
        %944 = vmatpush1.msra.mxu0 %v897
        %945 = vmatprep.subr.mxu0 0.0
        %946 = vmatpush1.msra.mxu0 %v896
        %947 = vmatprep.subr.mxu0 0.0
        %948 = vmatpush1.msra.mxu0 %v895
        %949 = vmatprep.subr.mxu0 0.0
        %950 = vmatpush1.msra.mxu0 %v894
        %951 = vmatprep.subr.mxu0 0.0
        %952 = vmatpush1.msra.mxu0 %v893
        %953 = vmatprep.subr.mxu0 0.0
        %954 = vmatpush1.msra.mxu0 %v892
        %955 = vmatprep.subr.mxu0 0.0
        %956 = vmatpush1.msra.mxu0 %v891
        %957 = vmatprep.subr.mxu0 0.0
        %958 = vmatpush2.msra.mxu0 0.0
        %959 = vmatprep.subr.mxu0 0.0
        %960 = vmatpush2.msra.mxu0 0.0
        %961 = vmatprep.subr.mxu0 0.0
        %962 = vmatpush2.msra.mxu0 0.0
        %963 = vmatprep.subr.mxu0 0.0
        %964 = vmatpush2.msra.mxu0 0.0
        %965 = vmatprep.subr.mxu0 0.0
        %966 = vmatpush2.msra.mxu0 0.0
        %967 = vmatprep.subr.mxu0 0.0
        %968 = vmatpush2.msra.mxu0 0.0
        %969 = vmatprep.subr.mxu0 0.0
        %970 = vmatpush2.msra.mxu0 0.0
        %971 = vmatprep.subr.mxu0 0.0
        %972 = vmatpush2.msra.mxu0 0.0
        %973 = vmatprep.subr.mxu0 0.0
        %974 = vmatpush2.msra.mxu0 0.0
        %975 = vmatprep.subr.mxu0 0.0
        %976 = vmatpush2.msra.mxu0 0.0
        %977 = vmatprep.subr.mxu0 0.0
        %978 = vmatpush2.msra.mxu0 0.0
        %979 = vmatprep.subr.mxu0 0.0
        %980 = vmatpush2.msra.mxu0 0.0
        %981 = vmatprep.subr.mxu0 0.0
        %982 = vmatpush2.msra.mxu0 0.0
        %983 = vmatprep.subr.mxu0 0.0
        %984 = vmatpush2.msra.mxu0 0.0
        %985 = vmatprep.subr.mxu0 0.0
        %986 = vmatpush2.msra.mxu0 %v908
        %987 = vmatprep.subr.mxu0 0.0
        %988 = vmatpush2.msra.mxu0 %v907
        %989 = vmatprep.mubr.f32.mxu0 %v921
        %990 = vmatmul.mubr.f32.gmra.mxu0 %v911
        %v991 = vpop.f32.mrf.mxu0
        %v992 = vadd.f32 0.0, %v991
        %v993 = vpop.f32.mrf.mxu0
        %994 = vmatprep.mubr.f32.mxu0 %v923
        %995 = vmatmul.mubr.f32.gmra.mxu0 %v916
        %v996 = vpop.f32.mrf.mxu0
        %v997 = vadd.f32 0.0, %v996
        %v998 = vpop.f32.mrf.mxu0
        %999 = vdwg.mxu0
        %v1000 = vadd.f32 %v882, %v992
        %v1001 = vadd.f32 %v887, %v997
        %v1002 = vld [vmem:[%s4] sm:$0x1]
        %v1004 = vlaneseq
        %v1005 = vshrl.u32 %v1004, 7
        %v1006 = vsub.s32 0, %v1005
        %v1007 = vrot.slane %v1002, %v1006
        %v1009 = vadd.f32 %v1000, %v1007
        %v1010 = vadd.f32 %v1001, %v1007
        %v1011 = vadd.f32 %v272, %v1009
        %v1012 = vadd.f32 %v273, %v1010
        %1013 = vst [vmem:[%s271] sm:$0xff] %v1011
        %1014 = vst [vmem:[%s271 + $0x8] sm:$0xff] %v1012
        %s1015 = sand.u32 %s141, 1
        %s1016 = scalar_lea.sflag [#allocation4], %s1015
        %s1017 = sand.u32 %s141, 1
        %s1018 = smul.addr %s1017, 16
        %s1019 = scalar_lea.vmem [#allocation8], %s1018
        // Predicated region
        $region53: #{tpu_custom_call.1} parent=39 // pred_check
          %p1020 = pneg %p151
        $region54: #{tpu_custom_call.1} parent=39 // pred_check_branch
          %1022 = sbr.rel (%p1020) target = $region56
        $region55: #{tpu_custom_call.1} parent=39 // pred_region
          %s1024 = ssub.s32 256, 256
          %1025 = vsyncadd %s1016, %s1024
          %s1026 = smul.addr %s23, 2
          %s1027 = smul.addr %s1026, 128
          %s1028 = scalar_lea.hbm %s5, %s1027
          %s1029 = sshll.u32 %s1019, 4
          %s1030 = int_to_ptr.vmem [resolvable:$true] %s1029
          %1035 = dma.vmem_to_hbm [thread:$0]  %s1030, 256, %s1028, %s1016, 128, 128, 8
        $region56: #{tpu_custom_call.1} parent=39 // pred_fallthru
          _
      $region40: #{tpu_custom_call.1} parent=5 // pred_fallthru
        _
      %p1036 = scmp.le.s32.totalorder 2, %s18
      // Predicated region
      $region57: #{tpu_custom_call.1} parent=5 // pred_check
        %p1037 = pneg %p1036
      $region58: #{tpu_custom_call.1} parent=5 // pred_check_branch
        %1039 = sbr.rel (%p1037) target = $region60
      $region59: #{tpu_custom_call.1} parent=5 // pred_region
        %s1040 = ssub.s32 %s18, 2
        // Predicated region
        $region61: #{tpu_custom_call.1} parent=59 // pred_check
          %p1041 = pneg %p157
        $region62: #{tpu_custom_call.1} parent=59 // pred_check_branch
          %1043 = sbr.rel (%p1041) target = $region64
        $region63: #{tpu_custom_call.1} parent=59 // pred_region
          %s1044 = sand.u32 %s142, 1
          %s1045 = scalar_lea.sflag [#allocation4], %s1044
          %s1046 = sand.u32 %s142, 1
          %s1047 = smul.addr %s1046, 16
          %s1048 = scalar_lea.vmem [#allocation8], %s1047
          %1049 = dma.done %s1045, 256
        $region64: #{tpu_custom_call.1} parent=59 // pred_fallthru
          _
      $region60: #{tpu_custom_call.1} parent=5 // pred_fallthru
        _
    $region6: #{tpu_custom_call.1} parent=1 // loop_footer
      %s22 = sadd.s32 1, %s18
    $region7: #{tpu_custom_call.1} parent=1 // loop_footer_branch
      %17 = sbr.rel target = $region3
    $region8: #{tpu_custom_call.1} parent=1 // loop_exit
      _
    %1050 = vsyncpa [#allocation3], 1
    %s1051 = scalar_lea.sflag [#allocation3], 1
    %1052 = vsyncpa %s1051, 1
    %1053 = vsyncpa [#allocation6], 1
    %1054 = vsyncpa [#allocation4], 1
    %s1055 = scalar_lea.sflag [#allocation4], 1
    %1056 = vsyncpa %s1055, 1

</llo_original>
